<compile_context>
chip_gen: v5e
topology: v5e:2x2
jax: 0.10.0
libtpu: 0.0.40
codegen_flags: <defaults>
</compile_context>

<pallas_src>
import functools

import jax
import jax.numpy as jnp
from jax import lax
from jax.experimental import pallas as pl
from jax.experimental.pallas import tpu as pltpu


def _multitask_bloss_kernel(anchors_ref, featsT_ref, anchor_lab_ref, lab_row_ref,
                            sup_ref, out_ref, m_sc, l_sc, s_sc, c_sc,
                            *, inv_temperature, temp_ratio, alpha):
    """One N-tile of the online-LSE supervised-contrastive accumulation.

    anchors_ref    : [bs, D]  bf16  (resident across the grid)
    featsT_ref     : [D, TN]  bf16  (current N-tile, lane-dense on N)
    anchor_lab_ref : [bs, 1]  i32   (resident)
    lab_row_ref    : [1, TN]  i32   (current N-tile of labels)
    sup_ref        : [bs, C]  f32   (resident, used only on the last tile)
    out_ref        : [1, 1]   f32   (combined loss, written on the last tile)
    m/l/s/c scratch: [bs, 1]  f32   running max / denom / sum(mask*logit) / count
    """
    j = pl.program_id(0)
    n_tiles = pl.num_programs(0)
    bs = anchors_ref.shape[0]
    tn = featsT_ref.shape[1]
    col_start = j * tn

    @pl.when(j == 0)
    def _init():
        m_sc[...] = jnp.full((bs, 1), -jnp.inf, jnp.float32)
        l_sc[...] = jnp.zeros((bs, 1), jnp.float32)
        s_sc[...] = jnp.zeros((bs, 1), jnp.float32)
        c_sc[...] = jnp.zeros((bs, 1), jnp.float32)

    # [bs, TN] logits for this tile: bf16 operands, f32 MXU accumulation.
    # The scalar 1/temperature is folded in as a multiply (not a divide).
    dots = jnp.dot(anchors_ref[...], featsT_ref[...],
                   preferred_element_type=jnp.float32)
    logits = dots * inv_temperature                                    # [bs, TN] f32

    # Positive mask (label match) with the self column removed, built once as a
    # bool mask (no extra f32 cast / multiply).  The self compare only matters on
    # the tile(s) intersecting the diagonal, but it is 3 cheap VPU ops so it is
    # kept unconditional for robustness.
    lab_row = lab_row_ref[...]                                         # [1, TN]
    anchor_lab = anchor_lab_ref[...]                                   # [bs, 1]
    pos_label = anchor_lab == lab_row                                  # [bs, TN] bool
    row_idx = lax.broadcasted_iota(jnp.int32, (bs, tn), 0)
    col_idx = col_start + lax.broadcasted_iota(jnp.int32, (bs, tn), 1)
    not_self = row_idx != col_idx
    pos = jnp.logical_and(pos_label, not_self)

    # Online log-sum-exp over the (self-masked) columns.  Note: the running max
    # is taken over *all* columns (incl. self), matching torch's logits_max.
    m_prev = m_sc[...]
    m_new = jnp.maximum(m_prev, jnp.max(logits, axis=1, keepdims=True))
    rescale = jnp.exp(m_prev - m_new)
    p = jnp.where(not_self, jnp.exp(logits - m_new), 0.0)
    l_sc[...] = rescale * l_sc[...] + jnp.sum(p, axis=1, keepdims=True)
    m_sc[...] = m_new

    # Max-independent accumulators for the numerator of mean_log_prob_pos.
    s_sc[...] += jnp.sum(jnp.where(pos, logits, 0.0), axis=1, keepdims=True)
    c_sc[...] += jnp.sum(pos.astype(jnp.float32), axis=1, keepdims=True)

    @pl.when(j == n_tiles - 1)
    def _finalize():
        # sum(mask*log_prob)/sum(mask) = s/c - m - log(sum_exp_shifted + 1e-12)
        # NOTE: matches PyTorch -> NaN if an anchor has no positives besides itself.
        # Exact divide here (runs once per call, off the hot loop).
        log_denom = jnp.log(l_sc[...] + 1e-12)
        mean_log_prob_pos = s_sc[...] / c_sc[...] - m_sc[...] - log_denom  # [bs, 1]
        loss_con = (-temp_ratio) * jnp.sum(mean_log_prob_pos, keepdims=True) * (1.0 / bs)

        # Cross-entropy on sup_logits (mean reduction, unweighted).
        # NOTE: assumes 0 <= label < C (PyTorch's cross_entropy would raise otherwise).
        sup = sup_ref[...]                                             # [bs, C] f32
        c_dim = sup.shape[1]
        z = sup - jnp.max(sup, axis=1, keepdims=True)
        lse = jnp.log(jnp.sum(jnp.exp(z), axis=1, keepdims=True))      # [bs, 1]
        cls_idx = lax.broadcasted_iota(jnp.int32, (bs, c_dim), 1)
        z_tgt = jnp.sum(jnp.where(anchor_lab == cls_idx, z, 0.0),
                        axis=1, keepdims=True)                         # [bs, 1]
        loss_ce = jnp.sum(lse - z_tgt, keepdims=True) * (1.0 / bs)     # [1, 1]

        out_ref[...] = loss_ce + alpha * loss_con


def _pick_tile_n(n, d, max_tile=2048, per_tile_budget_bytes=4 * 1024 * 1024):
    """Largest lane-aligned (multiple of 128) tile that evenly divides N and whose
    double-buffered bf16 [D, TN] slab stays within the per-tile VMEM budget.
    Falls back to the full N (single tile) if no multiple of 128 divides N."""
    if n < 128:
        return n
    budget_tn = per_tile_budget_bytes // max(1, 2 * d * 2)   # bf16, double-buffered
    cap = max(128, min(max_tile, (budget_tn // 128) * 128))
    tn = cap
    while tn >= 128:
        if n % tn == 0:
            return tn
        tn -= 128
    return n


def multitask_bloss(features, labels, sup_logits, *, K, alpha, beta=1.0, gamma=1.0,
                    supt=1.0, temperature=1.0, base_temperature=None,
                    max_tile_n=2048):
    """Pallas implementation of MultiTaskBLoss.forward (beta/gamma/supt unused, as in torch)."""
    base_temperature = temperature if base_temperature is None else base_temperature
    N, D = features.shape
    bs = N - K
    C = sup_logits.shape[1]

    labels = labels.reshape(-1).astype(jnp.int32)
    anchor_lab = labels[:bs].reshape(bs, 1)      # only the bs anchor labels (sublane view)
    lab_row = labels.reshape(1, N)               # full labels, lane view, tiled over N

    # bf16 matmul operands (halves HBM traffic for the dominant input); features are
    # presented pre-transposed ([D, N]) so the MXU sees a natural [bs,D] x [D,TN]
    # and the big streamed input is lane-dense on N.
    feats_bf16 = features.astype(jnp.bfloat16)
    anchors = feats_bf16[:bs, :]                 # [bs, D]
    featsT = feats_bf16.T                        # [D, N]

    tn = _pick_tile_n(N, D, max_tile=max_tile_n)
    n_tiles = N // tn

    kernel = functools.partial(
        _multitask_bloss_kernel,
        inv_temperature=float(1.0 / temperature),
        temp_ratio=float(temperature / base_temperature),
        alpha=float(alpha),
    )

    grid_spec = pltpu.PrefetchScalarGridSpec(
        num_scalar_prefetch=0,
        grid=(n_tiles,),
        in_specs=[
            pl.BlockSpec((bs, D), lambda j: (0, 0)),   # anchors, resident
            pl.BlockSpec((D, tn), lambda j: (0, j)),   # featsT N-tile (auto double-buffered)
            pl.BlockSpec((bs, 1), lambda j: (0, 0)),   # anchor labels, resident
            pl.BlockSpec((1, tn), lambda j: (0, j)),   # label row N-tile
            pl.BlockSpec((bs, C), lambda j: (0, 0)),   # sup_logits, resident
        ],
        out_specs=pl.BlockSpec((1, 1), lambda j: (0, 0)),
        scratch_shapes=[pltpu.VMEM((bs, 1), jnp.float32)] * 4,
    )

    out = pl.pallas_call(
        kernel,
        out_shape=jax.ShapeDtypeStruct((1, 1), jnp.float32),
        grid_spec=grid_spec,
        compiler_params=pltpu.CompilerParams(
            dimension_semantics=("arbitrary",),        # online-LSE reduction over N
            vmem_limit_bytes=32 * 1024 * 1024,         # explicit; safe on v5e/v6e/v7x
        ),
    )(anchors, featsT, anchor_lab, lab_row, sup_logits.astype(jnp.float32))
    return out[0, 0]


def _reference(features, labels, sup_logits, *, K, alpha, temperature, base_temperature):
    """Pure-JAX mirror of the PyTorch forward, for verification."""
    N = features.shape[0]
    bs = N - K
    labels = labels.reshape(-1, 1)
    # mirror the kernel's bf16 matmul operands (upcast back to f32 for the matmul)
    f = features.astype(jnp.bfloat16).astype(jnp.float32)
    mask = (labels[:bs] == labels.T).astype(jnp.float32)
    dots = (f[:bs] @ f.T) / temperature
    logits = dots - jnp.max(dots, axis=1, keepdims=True)
    logits_mask = 1.0 - jnp.eye(bs, N, dtype=jnp.float32)
    mask = mask * logits_mask
    exp_logits = jnp.exp(logits) * logits_mask
    log_prob = logits - jnp.log(exp_logits.sum(1, keepdims=True) + 1e-12)
    mean_log_prob_pos = (mask * log_prob).sum(1) / mask.sum(1)
    loss = (-(temperature / base_temperature) * mean_log_prob_pos).mean()
    # cross entropy
    z = sup_logits - jnp.max(sup_logits, axis=1, keepdims=True)
    lse = jnp.log(jnp.exp(z).sum(1))
    z_t = jnp.take_along_axis(z, labels[:bs], axis=1)[:, 0]
    loss_ce = (lse - z_t).mean()
    return loss_ce + alpha * loss


if __name__ == "__main__":
    # Small, module-consistent shapes: batch=8 anchors, K=248 queued features
    # (=> N=256 stored features), feature dim D=32, num_classes=16.
    batch, K, D, num_classes = 8, 248, 32, 16
    N = batch + K
    alpha, temperature = 1.0, 0.07

    key = jax.random.PRNGKey(0)
    k_feat, k_perm, k_sup = jax.random.split(key, 3)

    features = jax.random.normal(k_feat, (N, D), dtype=jnp.float32)
    features = features / jnp.linalg.norm(features, axis=1, keepdims=True)  # L2-normalized
    # deterministic labels: each class appears N/num_classes times, so every anchor
    # has positives besides itself (no 0/0 in mean_log_prob_pos, same as torch precondition).
    labels = jax.random.permutation(k_perm, jnp.arange(N, dtype=jnp.int32) % num_classes)
    sup_logits = jax.random.normal(k_sup, (batch, num_classes), dtype=jnp.float32)

    out = multitask_bloss(features, labels, sup_logits,
                          K=K, alpha=alpha, temperature=temperature,
                          max_tile_n=128)   # forces 2 N-tiles -> exercises the online-LSE grid
    out = jax.block_until_ready(out)

    ref = _reference(features, labels, sup_logits, K=K, alpha=alpha,
                     temperature=temperature, base_temperature=temperature)
    # Tolerance accounts for bf16 matmul operands.
    assert jnp.allclose(out, ref, rtol=5e-3, atol=5e-3), (out, ref)

    # Also exercise the single-tile path (tn == N) for coverage.
    out_single = jax.block_until_ready(
        multitask_bloss(features, labels, sup_logits,
                        K=K, alpha=alpha, temperature=temperature, max_tile_n=2048))
    assert jnp.allclose(out_single, ref, rtol=5e-3, atol=5e-3), (out_single, ref)

    print("KERNEL_OK")
</pallas_src>

<mosaic_0001>
module attributes {stable_mosaic.version = 11 : i64} {
  func.func @_multitask_bloss_kernel(%arg0: i32, %arg1: memref<8x32xbf16, #tpu.memory_space<vmem>>, %arg2: memref<32x128xbf16, #tpu.memory_space<vmem>>, %arg3: memref<8x1xi32, #tpu.memory_space<vmem>>, %arg4: memref<1x128xi32, #tpu.memory_space<vmem>>, %arg5: memref<8x16xf32, #tpu.memory_space<vmem>>, %arg6: memref<1x1xf32, #tpu.memory_space<vmem>>, %arg7: memref<8x1xf32, #tpu.memory_space<vmem>>, %arg8: memref<8x1xf32, #tpu.memory_space<vmem>>, %arg9: memref<8x1xf32, #tpu.memory_space<vmem>>, %arg10: memref<8x1xf32, #tpu.memory_space<vmem>>) attributes {dimension_semantics = [#tpu.dimension_semantics<arbitrary>], iteration_bounds = array<i64: 2>, scalar_prefetch = 0 : i64, scratch_operands = 4 : i64, tpu.core_type = #tpu.core_type<tc>, window_params = [{pipeline_mode = #tpu.pipeline_mode<synchronous>, transform_indices = @transform_0, window_bounds = array<i64: 8, 32>}, {transform_indices = @transform_1, window_bounds = array<i64: 32, 128>}, {pipeline_mode = #tpu.pipeline_mode<synchronous>, transform_indices = @transform_2, window_bounds = array<i64: 8, 1>}, {transform_indices = @transform_3, window_bounds = array<i64: 1, 128>}, {pipeline_mode = #tpu.pipeline_mode<synchronous>, transform_indices = @transform_4, window_bounds = array<i64: 8, 16>}, {pipeline_mode = #tpu.pipeline_mode<synchronous>, transform_indices = @transform_5, window_bounds = array<i64: 1, 1>}]} {
    %c128_i32 = arith.constant 128 : i32
    %0 = arith.muli %arg0, %c128_i32 : i32
    %c0_i32 = arith.constant 0 : i32
    %1 = arith.cmpi eq, %arg0, %c0_i32 : i32
    %2 = arith.extui %1 : i1 to i32
    %c0_i32_0 = arith.constant 0 : i32
    %3 = arith.cmpi ne, %2, %c0_i32_0 : i32
    scf.if %3 {
      %cst_32 = arith.constant 0xFF800000 : f32
      %55 = vector.broadcast %cst_32 : f32 to vector<8x1xf32>
      %c0_33 = arith.constant 0 : index
      %c0_34 = arith.constant 0 : index
      %56 = vector.load %arg7[%c0_33, %c0_34] : memref<8x1xf32, #tpu.memory_space<vmem>>, vector<8x1xf32>
      tpu.vector_store %arg7[%c0_33, %c0_34], %55 {strides = array<i32>} : memref<8x1xf32, #tpu.memory_space<vmem>>, vector<8x1xf32>,
      %cst_35 = arith.constant 0.000000e+00 : f32
      %57 = vector.broadcast %cst_35 : f32 to vector<8x1xf32>
      %c0_36 = arith.constant 0 : index
      %c0_37 = arith.constant 0 : index
      %58 = vector.load %arg8[%c0_36, %c0_37] : memref<8x1xf32, #tpu.memory_space<vmem>>, vector<8x1xf32>
      tpu.vector_store %arg8[%c0_36, %c0_37], %57 {strides = array<i32>} : memref<8x1xf32, #tpu.memory_space<vmem>>, vector<8x1xf32>,
      %cst_38 = arith.constant 0.000000e+00 : f32
      %59 = vector.broadcast %cst_38 : f32 to vector<8x1xf32>
      %c0_39 = arith.constant 0 : index
      %c0_40 = arith.constant 0 : index
      %60 = vector.load %arg9[%c0_39, %c0_40] : memref<8x1xf32, #tpu.memory_space<vmem>>, vector<8x1xf32>
      tpu.vector_store %arg9[%c0_39, %c0_40], %59 {strides = array<i32>} : memref<8x1xf32, #tpu.memory_space<vmem>>, vector<8x1xf32>,
      %cst_41 = arith.constant 0.000000e+00 : f32
      %61 = vector.broadcast %cst_41 : f32 to vector<8x1xf32>
      %c0_42 = arith.constant 0 : index
      %c0_43 = arith.constant 0 : index
      %62 = vector.load %arg10[%c0_42, %c0_43] : memref<8x1xf32, #tpu.memory_space<vmem>>, vector<8x1xf32>
      tpu.vector_store %arg10[%c0_42, %c0_43], %61 {strides = array<i32>} : memref<8x1xf32, #tpu.memory_space<vmem>>, vector<8x1xf32>,
    } else {
    }
    %c0 = arith.constant 0 : index
    %c0_1 = arith.constant 0 : index
    %4 = vector.load %arg1[%c0, %c0_1] : memref<8x32xbf16, #tpu.memory_space<vmem>>, vector<8x32xbf16>
    %c0_2 = arith.constant 0 : index
    %c0_3 = arith.constant 0 : index
    %5 = vector.load %arg2[%c0_2, %c0_3] : memref<32x128xbf16, #tpu.memory_space<vmem>>, vector<32x128xbf16>
    %cst = arith.constant dense<0.000000e+00> : vector<8x128xf32>
    %6 = tpu.matmul %4, %5, %cst {dimension_numbers = #tpu.dot_dimension_numbers<[1], [0], [0], [1], [0, 0, 1, 1], [], []>} : vector<8x32xbf16>, vector<32x128xbf16>, vector<8x128xf32> -> vector<8x128xf32>
    %cst_4 = arith.constant 14.2857141 : f32
    %7 = vector.broadcast %cst_4 : f32 to vector<8x128xf32>
    %8 = arith.mulf %6, %7 : vector<8x128xf32>
    %c0_5 = arith.constant 0 : index
    %c0_6 = arith.constant 0 : index
    %9 = vector.load %arg4[%c0_5, %c0_6] : memref<1x128xi32, #tpu.memory_space<vmem>>, vector<1x128xi32>
    %c0_7 = arith.constant 0 : index
    %c0_8 = arith.constant 0 : index
    %10 = vector.load %arg3[%c0_7, %c0_8] : memref<8x1xi32, #tpu.memory_space<vmem>>, vector<8x1xi32>
    %11 = vector.broadcast %10 : vector<8x1xi32> to vector<8x128xi32>
    %12 = vector.broadcast %9 : vector<1x128xi32> to vector<8x128xi32>
    %13 = arith.cmpi eq, %11, %12 : vector<8x128xi32>
    %14 = tpu.iota {dimensions = array<i32: 0>} : vector<8x128xi32>
    %15 = tpu.iota {dimensions = array<i32: 1>} : vector<8x128xi32>
    %16 = vector.broadcast %0 : i32 to vector<8x128xi32>
    %17 = arith.addi %16, %15 : vector<8x128xi32>
    %18 = arith.cmpi ne, %14, %17 : vector<8x128xi32>
    %19 = arith.andi %13, %18 : vector<8x128xi1>
    %c0_9 = arith.constant 0 : index
    %c0_10 = arith.constant 0 : index
    %20 = vector.load %arg7[%c0_9, %c0_10] : memref<8x1xf32, #tpu.memory_space<vmem>>, vector<8x1xf32>
    %cst_11 = arith.constant dense<0xFF800000> : vector<8xf32>
    %21 = vector.multi_reduction <maximumf>, %8, %cst_11 [1] : vector<8x128xf32> to vector<8xf32>
    %22 = vector.shape_cast %21 : vector<8xf32> to vector<8x1xf32>
    %23 = arith.maximumf %20, %22 : vector<8x1xf32>
    %24 = arith.subf %20, %23 : vector<8x1xf32>
    %25 = math.exp %24 : vector<8x1xf32>
    %26 = vector.broadcast %23 : vector<8x1xf32> to vector<8x128xf32>
    %27 = arith.subf %8, %26 : vector<8x128xf32>
    %28 = math.exp %27 : vector<8x128xf32>
    %cst_12 = arith.constant 0.000000e+00 : f32
    %29 = vector.broadcast %cst_12 : f32 to vector<8x128xf32>
    %30 = arith.select %18, %28, %29 : vector<8x128xi1>, vector<8x128xf32>
    %c0_13 = arith.constant 0 : index
    %c0_14 = arith.constant 0 : index
    %31 = vector.load %arg8[%c0_13, %c0_14] : memref<8x1xf32, #tpu.memory_space<vmem>>, vector<8x1xf32>
    %32 = arith.mulf %25, %31 : vector<8x1xf32>
    %cst_15 = arith.constant dense<0.000000e+00> : vector<8xf32>
    %33 = vector.multi_reduction <add>, %30, %cst_15 [1] : vector<8x128xf32> to vector<8xf32>
    %34 = vector.shape_cast %33 : vector<8xf32> to vector<8x1xf32>
    %35 = arith.addf %32, %34 : vector<8x1xf32>
    %c0_16 = arith.constant 0 : index
    %c0_17 = arith.constant 0 : index
    %36 = vector.load %arg8[%c0_16, %c0_17] : memref<8x1xf32, #tpu.memory_space<vmem>>, vector<8x1xf32>
    tpu.vector_store %arg8[%c0_16, %c0_17], %35 {strides = array<i32>} : memref<8x1xf32, #tpu.memory_space<vmem>>, vector<8x1xf32>,
    %c0_18 = arith.constant 0 : index
    %c0_19 = arith.constant 0 : index
    %37 = vector.load %arg7[%c0_18, %c0_19] : memref<8x1xf32, #tpu.memory_space<vmem>>, vector<8x1xf32>
    tpu.vector_store %arg7[%c0_18, %c0_19], %23 {strides = array<i32>} : memref<8x1xf32, #tpu.memory_space<vmem>>, vector<8x1xf32>,
    %c0_20 = arith.constant 0 : index
    %c0_21 = arith.constant 0 : index
    %38 = vector.load %arg9[%c0_20, %c0_21] : memref<8x1xf32, #tpu.memory_space<vmem>>, vector<8x1xf32>
    %cst_22 = arith.constant 0.000000e+00 : f32
    %39 = vector.broadcast %cst_22 : f32 to vector<8x128xf32>
    %40 = arith.select %19, %8, %39 : vector<8x128xi1>, vector<8x128xf32>
    %cst_23 = arith.constant dense<0.000000e+00> : vector<8xf32>
    %41 = vector.multi_reduction <add>, %40, %cst_23 [1] : vector<8x128xf32> to vector<8xf32>
    %42 = vector.shape_cast %41 : vector<8xf32> to vector<8x1xf32>
    %43 = arith.addf %38, %42 : vector<8x1xf32>
    %c0_24 = arith.constant 0 : index
    %c0_25 = arith.constant 0 : index
    %44 = vector.load %arg9[%c0_24, %c0_25] : memref<8x1xf32, #tpu.memory_space<vmem>>, vector<8x1xf32>
    tpu.vector_store %arg9[%c0_24, %c0_25], %43 {strides = array<i32>} : memref<8x1xf32, #tpu.memory_space<vmem>>, vector<8x1xf32>,
    %c0_26 = arith.constant 0 : index
    %c0_27 = arith.constant 0 : index
    %45 = vector.load %arg10[%c0_26, %c0_27] : memref<8x1xf32, #tpu.memory_space<vmem>>, vector<8x1xf32>
    %46 = arith.extui %19 : vector<8x128xi1> to vector<8x128xi32>
    %47 = arith.sitofp %46 : vector<8x128xi32> to vector<8x128xf32>
    %cst_28 = arith.constant dense<0.000000e+00> : vector<8xf32>
    %48 = vector.multi_reduction <add>, %47, %cst_28 [1] : vector<8x128xf32> to vector<8xf32>
    %49 = vector.shape_cast %48 : vector<8xf32> to vector<8x1xf32>
    %50 = arith.addf %45, %49 : vector<8x1xf32>
    %c0_29 = arith.constant 0 : index
    %c0_30 = arith.constant 0 : index
    %51 = vector.load %arg10[%c0_29, %c0_30] : memref<8x1xf32, #tpu.memory_space<vmem>>, vector<8x1xf32>
    tpu.vector_store %arg10[%c0_29, %c0_30], %50 {strides = array<i32>} : memref<8x1xf32, #tpu.memory_space<vmem>>, vector<8x1xf32>,
    %c1_i32 = arith.constant 1 : i32
    %52 = arith.cmpi eq, %arg0, %c1_i32 : i32
    %53 = arith.extui %52 : i1 to i32
    %c0_i32_31 = arith.constant 0 : i32
    %54 = arith.cmpi ne, %53, %c0_i32_31 : i32
    scf.if %54 {
      %c0_32 = arith.constant 0 : index
      %c0_33 = arith.constant 0 : index
      %55 = vector.load %arg8[%c0_32, %c0_33] : memref<8x1xf32, #tpu.memory_space<vmem>>, vector<8x1xf32>
      %cst_34 = arith.constant 9.99999996E-13 : f32
      %56 = vector.broadcast %cst_34 : f32 to vector<8x1xf32>
      %57 = arith.addf %55, %56 : vector<8x1xf32>
      %58 = math.log %57 : vector<8x1xf32>
      %c0_35 = arith.constant 0 : index
      %c0_36 = arith.constant 0 : index
      %59 = vector.load %arg9[%c0_35, %c0_36] : memref<8x1xf32, #tpu.memory_space<vmem>>, vector<8x1xf32>
      %c0_37 = arith.constant 0 : index
      %c0_38 = arith.constant 0 : index
      %60 = vector.load %arg10[%c0_37, %c0_38] : memref<8x1xf32, #tpu.memory_space<vmem>>, vector<8x1xf32>
      %61 = arith.divf %59, %60 : vector<8x1xf32>
      %c0_39 = arith.constant 0 : index
      %c0_40 = arith.constant 0 : index
      %62 = vector.load %arg7[%c0_39, %c0_40] : memref<8x1xf32, #tpu.memory_space<vmem>>, vector<8x1xf32>
      %63 = arith.subf %61, %62 : vector<8x1xf32>
      %64 = arith.subf %63, %58 : vector<8x1xf32>
      %65 = vector.shape_cast %64 : vector<8x1xf32> to vector<1x8x1xf32>
      %cst_41 = arith.constant dense<0.000000e+00> : vector<1xf32>
      %66 = vector.multi_reduction <add>, %65, %cst_41 [1, 2] : vector<1x8x1xf32> to vector<1xf32>
      %67 = vector.shape_cast %66 : vector<1xf32> to vector<1x1x1xf32>
      %68 = vector.extract %67[0, 0, 0] : f32 from vector<1x1x1xf32>
      %69 = vector.broadcast %68 : f32 to vector<1x1xf32>
      %cst_42 = arith.constant -1.000000e+00 : f32
      %70 = vector.broadcast %cst_42 : f32 to vector<1x1xf32>
      %71 = arith.mulf %70, %69 : vector<1x1xf32>
      %cst_43 = arith.constant 1.250000e-01 : f32
      %72 = vector.broadcast %cst_43 : f32 to vector<1x1xf32>
      %73 = arith.mulf %71, %72 : vector<1x1xf32>
      %c0_44 = arith.constant 0 : index
      %c0_45 = arith.constant 0 : index
      %74 = vector.load %arg5[%c0_44, %c0_45] : memref<8x16xf32, #tpu.memory_space<vmem>>, vector<8x16xf32>
      %cst_46 = arith.constant dense<0xFF800000> : vector<8xf32>
      %75 = vector.multi_reduction <maximumf>, %74, %cst_46 [1] : vector<8x16xf32> to vector<8xf32>
      %76 = vector.shape_cast %75 : vector<8xf32> to vector<8x1xf32>
      %77 = vector.broadcast %76 : vector<8x1xf32> to vector<8x16xf32>
      %78 = arith.subf %74, %77 : vector<8x16xf32>
      %79 = math.exp %78 : vector<8x16xf32>
      %cst_47 = arith.constant dense<0.000000e+00> : vector<8xf32>
      %80 = vector.multi_reduction <add>, %79, %cst_47 [1] : vector<8x16xf32> to vector<8xf32>
      %81 = vector.shape_cast %80 : vector<8xf32> to vector<8x1xf32>
      %82 = math.log %81 : vector<8x1xf32>
      %83 = tpu.iota {dimensions = array<i32: 1>} : vector<8x16xi32>
      %84 = vector.broadcast %10 : vector<8x1xi32> to vector<8x16xi32>
      %85 = arith.cmpi eq, %84, %83 : vector<8x16xi32>
      %cst_48 = arith.constant 0.000000e+00 : f32
      %86 = vector.broadcast %cst_48 : f32 to vector<8x16xf32>
      %87 = arith.select %85, %78, %86 : vector<8x16xi1>, vector<8x16xf32>
      %cst_49 = arith.constant dense<0.000000e+00> : vector<8xf32>
      %88 = vector.multi_reduction <add>, %87, %cst_49 [1] : vector<8x16xf32> to vector<8xf32>
      %89 = vector.shape_cast %88 : vector<8xf32> to vector<8x1xf32>
      %90 = arith.subf %82, %89 : vector<8x1xf32>
      %91 = vector.shape_cast %90 : vector<8x1xf32> to vector<1x8x1xf32>
      %cst_50 = arith.constant dense<0.000000e+00> : vector<1xf32>
      %92 = vector.multi_reduction <add>, %91, %cst_50 [1, 2] : vector<1x8x1xf32> to vector<1xf32>
      %93 = vector.shape_cast %92 : vector<1xf32> to vector<1x1x1xf32>
      %94 = vector.extract %93[0, 0, 0] : f32 from vector<1x1x1xf32>
      %95 = vector.broadcast %94 : f32 to vector<1x1xf32>
      %cst_51 = arith.constant 1.250000e-01 : f32
      %96 = vector.broadcast %cst_51 : f32 to vector<1x1xf32>
      %97 = arith.mulf %95, %96 : vector<1x1xf32>
      %cst_52 = arith.constant 1.000000e+00 : f32
      %98 = vector.broadcast %cst_52 : f32 to vector<1x1xf32>
      %99 = arith.mulf %98, %73 : vector<1x1xf32>
      %100 = arith.addf %97, %99 : vector<1x1xf32>
      %c0_53 = arith.constant 0 : index
      %c0_54 = arith.constant 0 : index
      %101 = vector.load %arg6[%c0_53, %c0_54] : memref<1x1xf32, #tpu.memory_space<vmem>>, vector<1x1xf32>
      tpu.vector_store %arg6[%c0_53, %c0_54], %100 {strides = array<i32>} : memref<1x1xf32, #tpu.memory_space<vmem>>, vector<1x1xf32>,
    } else {
    }
    return
  }
  func.func @transform_0(%arg0: i32) -> (i32, i32) {
    %c0_i32 = arith.constant 0 : i32
    %c0_i32_0 = arith.constant 0 : i32
    %c0_i32_1 = arith.constant 0 : i32
    return %c0_i32, %c0_i32_0 : i32, i32
  }
  func.func @transform_1(%arg0: i32) -> (i32, i32) {
    %c0_i32 = arith.constant 0 : i32
    %c0_i32_0 = arith.constant 0 : i32
    return %c0_i32, %arg0 : i32, i32
  }
  func.func @transform_2(%arg0: i32) -> (i32, i32) {
    %c0_i32 = arith.constant 0 : i32
    %c0_i32_0 = arith.constant 0 : i32
    %c0_i32_1 = arith.constant 0 : i32
    return %c0_i32, %c0_i32_0 : i32, i32
  }
  func.func @transform_3(%arg0: i32) -> (i32, i32) {
    %c0_i32 = arith.constant 0 : i32
    %c0_i32_0 = arith.constant 0 : i32
    return %c0_i32, %arg0 : i32, i32
  }
  func.func @transform_4(%arg0: i32) -> (i32, i32) {
    %c0_i32 = arith.constant 0 : i32
    %c0_i32_0 = arith.constant 0 : i32
    %c0_i32_1 = arith.constant 0 : i32
    return %c0_i32, %c0_i32_0 : i32, i32
  }
  func.func @transform_5(%arg0: i32) -> (i32, i32) {
    %c0_i32 = arith.constant 0 : i32
    %c0_i32_0 = arith.constant 0 : i32
    %c0_i32_1 = arith.constant 0 : i32
    return %c0_i32, %c0_i32_0 : i32, i32
  }
}

</mosaic_0001>

<llo_original>
// kernel: tpu_custom_call.1
$region0: #{tpu_custom_call.1}
  #allocation0 [shape = 'u32[]', space=smem, size = 0x4, offset = 0x4, fixed_abs, tag = 'smem constant byte address 0x4 - core index']
  #allocation1 [shape = 'u32[72,128]{1,0:T(1,128)}', space=vmem, size = 0x9000, scoped, tag = 'internal scratch']
  #allocation2 [shape = 'f32[8,1]{1,0:T(8,128)}', space=vmem, size = 0x1000, scoped, tag = 'scratch operand']
  #allocation3 [shape = 'f32[8,1]{1,0:T(8,128)}', space=vmem, size = 0x1000, scoped, tag = 'scratch operand']
  #allocation4 [shape = 'f32[8,1]{1,0:T(8,128)}', space=vmem, size = 0x1000, scoped, tag = 'scratch operand']
  #allocation5 [shape = 'f32[8,1]{1,0:T(8,128)}', space=vmem, size = 0x1000, scoped, tag = 'scratch operand']
  %s0 = inlined_call_operand.hbm [shape: bf16[8,32], index: 0, kind: input, shape index: {}]
  %s1 = inlined_call_operand.hbm [shape: bf16[32,256], index: 1, kind: input, shape index: {}]
  %s2 = inlined_call_operand.vmem [shape: s32[8,1], index: 2, kind: input, shape index: {}]
  %s3 = inlined_call_operand.hbm [shape: s32[1,256], index: 3, kind: input, shape index: {}]
  %s4 = inlined_call_operand.vmem [shape: f32[8,16], index: 4, kind: input, shape index: {}]
  %s5 = inlined_call_operand.hbm [shape: f32[1,1], index: 5, kind: output, shape index: {}]
  %s6 = sld [smem:[#allocation0]]
  $region73: #{tpu_custom_call.1} parent=0
    _
  %s8 = ssub.s32 1, %s6
  %s9 = scalar_select 0, %s8, %s6
  $region1: #{tpu_custom_call.1} parent=0
    #allocation6 [shape = 'u8[2048]{0}', space=vmem, size = 0x800, scoped, tag = 'input window, operand 0, single buffered']
    #allocation7 [shape = 's32[2]{0}', space=sflag, size = 0x8, scoped, tag = 'scoped memory for tpu_custom_call.1']
    #allocation8 [shape = 's32[2]{0}', space=sflag, size = 0x8, scoped, tag = 'scoped memory for tpu_custom_call.1']
    #allocation9 [shape = 'u8[16384]{0}', space=vmem, size = 0x4000, scoped, tag = 'input window, operand 1']
    #allocation10 [shape = 's32[2]{0}', space=sflag, size = 0x8, scoped, tag = 'scoped memory for tpu_custom_call.1']
    #allocation11 [shape = 'u8[1024]{0}', space=vmem, size = 0x400, scoped, tag = 'input window, operand 3']
    #allocation12 [shape = 'u8[512]{0}', space=vmem, size = 0x400, scoped, tag = 'output window, operand 0, single buffered']
    %10 = vsyncpa [#allocation7], 0
    %11 = vsyncpa [#allocation10], 0
    %s12 = scalar_lea.sflag [#allocation10], 1
    %13 = vsyncpa %s12, 0
    %14 = vsyncpa [#allocation8], 0
    loop: start=0, step=1, limit=4
    $region2: #{tpu_custom_call.1} parent=1 // loop_pre_header
      _
    $region3: #{tpu_custom_call.1} parent=1 // loop_header
      %s16 = sphi 0, %s20
      %p17 = scmp.ge.s32.totalorder %s16, 4
      %s24 = sphi 0, %s24
      %s26 = sphi 0, %s24
      %s27 = sphi 0, %s26
      %s41 = sphi 0, %s27
      %s47 = sphi 0, %s49
      %s50 = sphi 0, %s47
      %s51 = sphi 0, %s50
      %s67 = sphi 0, %s51
      %s71 = sphi 0, %s71
      %s73 = sphi 0, %s71
      %s74 = sphi 0, %s73
      %s88 = sphi 0, %s74
      %s94 = sphi 0, %s96
      %s97 = sphi 0, %s94
      %s98 = sphi 0, %s97
      %s114 = sphi 0, %s98
      %s118 = sphi 0, %s118
      %s120 = sphi 0, %s118
      %s121 = sphi 0, %s120
      %s135 = sphi 0, %s121
      %s139 = sphi 0, %s139
      %s141 = sphi 0, %s139
      %s142 = sphi 0, %s141
      %s156 = sphi 0, %s142
    $region4: #{tpu_custom_call.1} parent=1 // loop_header_branch
      %19 = sbr.rel (%p17) target = $region8
    $region5: #{tpu_custom_call.1} parent=1 // loop_body
      %s21 = ssub.s32 %s16, 1
      %s22 = ssub.s32 %s16, 2
      %s23 = sadd.s32 %s16, 1
      %s25 = sadd.s32 %s24, 1
      %p28 = scmp.eq.s32.totalorder %s16, 1
      %p29 = scmp.ne.s32.totalorder %s24, %s26
      %p30 = scmp.eq.s32.totalorder %s16, 0
      %p31 = por %p29, %p30
      %p32 = scmp.ne.s32.totalorder %s24, %s26
      %p33 = scmp.eq.s32.totalorder %s21, 1
      %p34 = por %p32, %p33
      %p35 = scmp.ne.s32.totalorder %s26, %s27
      %p36 = scmp.eq.s32.totalorder %s21, 0
      %p37 = por %p35, %p36
      %p38 = scmp.ne.s32.totalorder %s26, %s27
      %p39 = scmp.eq.s32.totalorder %s22, 1
      %p40 = por %p38, %p39
      %p42 = scmp.ne.s32.totalorder %s27, %s41
      %p43 = scmp.eq.s32.totalorder %s22, 0
      %p44 = por %p42, %p43
      %s45 = ssub.s32 %s16, %s23
      %p46 = scmp.eq.s32.totalorder %s45, 0
      %s48 = sadd.s32 %s47, 1
      %s49 = scalar_select %p46, %s47, %s48
      %p52 = pneg %p46
      %p53 = scmp.eq.s32.totalorder %s16, 1
      %p54 = por %p52, %p53
      %p55 = scmp.ne.s32.totalorder %s47, %s50
      %p56 = scmp.eq.s32.totalorder %s16, 0
      %p57 = por %p55, %p56
      %p58 = scmp.ne.s32.totalorder %s47, %s50
      %p59 = scmp.eq.s32.totalorder %s21, 1
      %p60 = por %p58, %p59
      %p61 = scmp.ne.s32.totalorder %s50, %s51
      %p62 = scmp.eq.s32.totalorder %s21, 0
      %p63 = por %p61, %p62
      %p64 = scmp.ne.s32.totalorder %s50, %s51
      %p65 = scmp.eq.s32.totalorder %s22, 1
      %p66 = por %p64, %p65
      %p68 = scmp.ne.s32.totalorder %s51, %s67
      %p69 = scmp.eq.s32.totalorder %s22, 0
      %p70 = por %p68, %p69
      %s72 = sadd.s32 %s71, 1
      %p75 = scmp.eq.s32.totalorder %s16, 1
      %p76 = scmp.ne.s32.totalorder %s71, %s73
      %p77 = scmp.eq.s32.totalorder %s16, 0
      %p78 = por %p76, %p77
      %p79 = scmp.ne.s32.totalorder %s71, %s73
      %p80 = scmp.eq.s32.totalorder %s21, 1
      %p81 = por %p79, %p80
      %p82 = scmp.ne.s32.totalorder %s73, %s74
      %p83 = scmp.eq.s32.totalorder %s21, 0
      %p84 = por %p82, %p83
      %p85 = scmp.ne.s32.totalorder %s73, %s74
      %p86 = scmp.eq.s32.totalorder %s22, 1
      %p87 = por %p85, %p86
      %p89 = scmp.ne.s32.totalorder %s74, %s88
      %p90 = scmp.eq.s32.totalorder %s22, 0
      %p91 = por %p89, %p90
      %s92 = ssub.s32 %s16, %s23
      %p93 = scmp.eq.s32.totalorder %s92, 0
      %s95 = sadd.s32 %s94, 1
      %s96 = scalar_select %p93, %s94, %s95
      %p99 = pneg %p93
      %p100 = scmp.eq.s32.totalorder %s16, 1
      %p101 = por %p99, %p100
      %p102 = scmp.ne.s32.totalorder %s94, %s97
      %p103 = scmp.eq.s32.totalorder %s16, 0
      %p104 = por %p102, %p103
      %p105 = scmp.ne.s32.totalorder %s94, %s97
      %p106 = scmp.eq.s32.totalorder %s21, 1
      %p107 = por %p105, %p106
      %p108 = scmp.ne.s32.totalorder %s97, %s98
      %p109 = scmp.eq.s32.totalorder %s21, 0
      %p110 = por %p108, %p109
      %p111 = scmp.ne.s32.totalorder %s97, %s98
      %p112 = scmp.eq.s32.totalorder %s22, 1
      %p113 = por %p111, %p112
      %p115 = scmp.ne.s32.totalorder %s98, %s114
      %p116 = scmp.eq.s32.totalorder %s22, 0
      %p117 = por %p115, %p116
      %s119 = sadd.s32 %s118, 1
      %p122 = scmp.eq.s32.totalorder %s16, 1
      %p123 = scmp.ne.s32.totalorder %s118, %s120
      %p124 = scmp.eq.s32.totalorder %s16, 0
      %p125 = por %p123, %p124
      %p126 = scmp.ne.s32.totalorder %s118, %s120
      %p127 = scmp.eq.s32.totalorder %s21, 1
      %p128 = por %p126, %p127
      %p129 = scmp.ne.s32.totalorder %s120, %s121
      %p130 = scmp.eq.s32.totalorder %s21, 0
      %p131 = por %p129, %p130
      %p132 = scmp.ne.s32.totalorder %s120, %s121
      %p133 = scmp.eq.s32.totalorder %s22, 1
      %p134 = por %p132, %p133
      %p136 = scmp.ne.s32.totalorder %s121, %s135
      %p137 = scmp.eq.s32.totalorder %s22, 0
      %p138 = por %p136, %p137
      %s140 = sadd.s32 %s139, 1
      %p143 = scmp.eq.s32.totalorder %s16, 1
      %p144 = scmp.ne.s32.totalorder %s139, %s141
      %p145 = scmp.eq.s32.totalorder %s16, 0
      %p146 = por %p144, %p145
      %p147 = scmp.ne.s32.totalorder %s139, %s141
      %p148 = scmp.eq.s32.totalorder %s21, 1
      %p149 = por %p147, %p148
      %p150 = scmp.ne.s32.totalorder %s141, %s142
      %p151 = scmp.eq.s32.totalorder %s21, 0
      %p152 = por %p150, %p151
      %p153 = scmp.ne.s32.totalorder %s141, %s142
      %p154 = scmp.eq.s32.totalorder %s22, 1
      %p155 = por %p153, %p154
      %p157 = scmp.ne.s32.totalorder %s142, %s156
      %p158 = scmp.eq.s32.totalorder %s22, 0
      %p159 = por %p157, %p158
      %p160 = scmp.le.s32.totalorder 1, %s16
      %p161 = scmp.lt.s32.totalorder %s16, 3
      %p162 = pnand %p160, %p161
      %p163 = pneg %p162
      // Predicated region
      $region9: #{tpu_custom_call.1} parent=5 // pred_check
        _
      $region10: #{tpu_custom_call.1} parent=5 // pred_check_branch
        %165 = sbr.rel (%p162) target = $region12
      $region11: #{tpu_custom_call.1} parent=5 // pred_region
        %s166 = ssub.s32 %s16, 1
        // Predicated region
        $region13: #{tpu_custom_call.1} parent=11 // pred_check
          %p167 = pneg %p37
        $region14: #{tpu_custom_call.1} parent=11 // pred_check_branch
          %169 = sbr.rel (%p167) target = $region16
        $region15: #{tpu_custom_call.1} parent=11 // pred_region
          %171 = vsyncadd [#allocation7], 0
          %s173 = sshll.u32 %s0, 4
          %s174 = int_to_ptr.hbm [resolvable:$true] %s173
          %s175 = sshll.u32 [#allocation6], 4
          %s176 = int_to_ptr.vmem [resolvable:$true] %s175
          %178 = dma.hbm_to_vmem [thread:$0]  %s174, 64, %s176, [#allocation7]
        $region16: #{tpu_custom_call.1} parent=11 // pred_fallthru
          _
        // Predicated region
        $region17: #{tpu_custom_call.1} parent=11 // pred_check
          %p179 = pneg %p84
        $region18: #{tpu_custom_call.1} parent=11 // pred_check_branch
          %181 = sbr.rel (%p179) target = $region20
        $region19: #{tpu_custom_call.1} parent=11 // pred_region
          _
        $region20: #{tpu_custom_call.1} parent=11 // pred_fallthru
          _
        // Predicated region
        $region21: #{tpu_custom_call.1} parent=11 // pred_check
          %p182 = pneg %p131
        $region22: #{tpu_custom_call.1} parent=11 // pred_check_branch
          %184 = sbr.rel (%p182) target = $region24
        $region23: #{tpu_custom_call.1} parent=11 // pred_region
          _
        $region24: #{tpu_custom_call.1} parent=11 // pred_fallthru
          _
      $region12: #{tpu_custom_call.1} parent=5 // pred_fallthru
        _
      %p185 = scmp.lt.s32.totalorder %s16, 2
      // Predicated region
      $region25: #{tpu_custom_call.1} parent=5 // pred_check
        %p186 = pneg %p185
      $region26: #{tpu_custom_call.1} parent=5 // pred_check_branch
        %188 = sbr.rel (%p186) target = $region28
      $region27: #{tpu_custom_call.1} parent=5 // pred_region
        // Predicated region
        $region29: #{tpu_custom_call.1} parent=27 // pred_check
          %p189 = pneg %p57
        $region30: #{tpu_custom_call.1} parent=27 // pred_check_branch
          %191 = sbr.rel (%p189) target = $region32
        $region31: #{tpu_custom_call.1} parent=27 // pred_region
          %s192 = sand.u32 %s16, 1
          %s193 = scalar_lea.sflag [#allocation10], %s192
          %s194 = sand.u32 %s47, 1
          %s195 = smul.addr %s194, 16
          %s196 = scalar_lea.vmem [#allocation9], %s195
          %198 = vsyncadd %s193, 0
          %s199 = smul.addr %s16, 4
          %s200 = scalar_lea.hbm %s1, %s199
          %s201 = sshll.u32 %s200, 4
          %s202 = int_to_ptr.hbm [resolvable:$true] %s201
          %s203 = sshll.u32 %s196, 4
          %s204 = int_to_ptr.vmem [resolvable:$true] %s203
          %209 = dma.hbm_to_vmem [thread:$0]  %s202, 256, %s204, %s193, 128, 64, 4
        $region32: #{tpu_custom_call.1} parent=27 // pred_fallthru
          _
        // Predicated region
        $region33: #{tpu_custom_call.1} parent=27 // pred_check
          %p210 = pneg %p104
        $region34: #{tpu_custom_call.1} parent=27 // pred_check_branch
          %212 = sbr.rel (%p210) target = $region36
        $region35: #{tpu_custom_call.1} parent=27 // pred_region
          %s213 = sand.u32 %s16, 1
          %s214 = scalar_lea.sflag [#allocation10], %s213
          %s215 = sand.u32 %s94, 1
          %s216 = scalar_lea.vmem [#allocation11], %s215
          %218 = vsyncadd %s214, 0
          %s219 = scalar_lea.hbm %s3, %s16
          %s221 = sshll.u32 %s219, 4
          %s222 = int_to_ptr.hbm [resolvable:$true] %s221
          %s223 = sshll.u32 %s216, 4
          %s224 = int_to_ptr.vmem [resolvable:$true] %s223
          %226 = dma.hbm_to_vmem [thread:$0]  %s222, 16, %s224, %s214
        $region36: #{tpu_custom_call.1} parent=27 // pred_fallthru
          _
      $region28: #{tpu_custom_call.1} parent=5 // pred_fallthru
        _
      %p227 = scmp.le.s32.totalorder 1, %s16
      %p228 = scmp.lt.s32.totalorder %s16, 3
      %p229 = pnand %p227, %p228
      %p230 = pneg %p229
      // Predicated region
      $region37: #{tpu_custom_call.1} parent=5 // pred_check
        _
      $region38: #{tpu_custom_call.1} parent=5 // pred_check_branch
        %232 = sbr.rel (%p229) target = $region40
      $region39: #{tpu_custom_call.1} parent=5 // pred_region
        %s233 = ssub.s32 %s16, 1
        // Predicated region
        $region41: #{tpu_custom_call.1} parent=39 // pred_check
          %p234 = pneg %p37
        $region42: #{tpu_custom_call.1} parent=39 // pred_check_branch
          %236 = sbr.rel (%p234) target = $region44
        $region43: #{tpu_custom_call.1} parent=39 // pred_region
          %238 = dma.done [#allocation7], 64
        $region44: #{tpu_custom_call.1} parent=39 // pred_fallthru
          _
        %s239 = sand.u32 %s21, 1
        %s240 = scalar_lea.sflag [#allocation10], %s239
        %s241 = sand.u32 %s50, 1
        %s242 = smul.addr %s241, 16
        %s243 = scalar_lea.vmem [#allocation9], %s242
        // Predicated region
        $region45: #{tpu_custom_call.1} parent=39 // pred_check
          %p244 = pneg %p63
        $region46: #{tpu_custom_call.1} parent=39 // pred_check_branch
          %246 = sbr.rel (%p244) target = $region48
        $region47: #{tpu_custom_call.1} parent=39 // pred_region
          %248 = dma.done %s240, 256
        $region48: #{tpu_custom_call.1} parent=39 // pred_fallthru
          _
        %s249 = sand.u32 %s21, 1
        %s250 = scalar_lea.sflag [#allocation10], %s249
        %s251 = sand.u32 %s97, 1
        %s252 = scalar_lea.vmem [#allocation11], %s251
        // Predicated region
        $region49: #{tpu_custom_call.1} parent=39 // pred_check
          %p253 = pneg %p110
        $region50: #{tpu_custom_call.1} parent=39 // pred_check_branch
          %255 = sbr.rel (%p253) target = $region52
        $region51: #{tpu_custom_call.1} parent=39 // pred_region
          %257 = dma.done %s250, 16
        $region52: #{tpu_custom_call.1} parent=39 // pred_fallthru
          _
        %p258 = pneg %p37
        %p259 = pneg %p34
        %s260 = sand.u32 %s21, 1
        %s261 = scalar_lea.sflag [#allocation10], %s260
        %s262 = sand.u32 %s50, 1
        %s263 = smul.addr %s262, 16
        %s264 = scalar_lea.vmem [#allocation9], %s263
        %p265 = pneg %p63
        %p266 = pneg %p60
        %p267 = pneg %p84
        %p268 = pneg %p81
        %s269 = sand.u32 %s21, 1
        %s270 = scalar_lea.sflag [#allocation10], %s269
        %s271 = sand.u32 %s97, 1
        %s272 = scalar_lea.vmem [#allocation11], %s271
        %p273 = pneg %p110
        %p274 = pneg %p107
        %p275 = pneg %p131
        %p276 = pneg %p128
        %p277 = pneg %p152
        %p278 = pneg %p149
        %s280 = smul.u32 %s21, 128
        %p281 = scmp.eq.s32.totalorder %s21, 0
        // Predicated region
        $region53: #{tpu_custom_call.1} parent=39 // pred_check
          %p282 = pneg %p281
        $region54: #{tpu_custom_call.1} parent=39 // pred_check_branch
          %284 = sbr.rel (%p282) target = $region56
        $region55: #{tpu_custom_call.1} parent=39 // pred_region
          %vm285 = vcmask 7168
          %286 = vst.msk [vmem:[#allocation2] sm:$0xff] %vm285, -inf
          %287 = vst.msk [vmem:[#allocation3] sm:$0xff] %vm285, 0.0
          %288 = vst.msk [vmem:[#allocation4] sm:$0xff] %vm285, 0.0
          %289 = vst.msk [vmem:[#allocation5] sm:$0xff] %vm285, 0.0
        $region56: #{tpu_custom_call.1} parent=39 // pred_fallthru
          _
        %v290 = vld [vmem:[#allocation6] sm:$0xf]
        %v291 = vld [vmem:[%s243] sm:$0xf]
        %v292 = vld [vmem:[%s243 + $0x4] sm:$0xf]
        %v293 = vld [vmem:[%s243 + $0x8] sm:$0xf]
        %v294 = vld [vmem:[%s243 + $0xc] sm:$0xf]
        %v299 = vunpack.c.l.b16 %v291
        %v300 = vunpack.c.l.b16 %v292
        %v301 = vunpack.c.l.b16 %v293
        %v302 = vunpack.c.l.b16 %v294
        %v303 = vpack.c.b16 %v300, %v299
        %v304 = vpack.c.b16 %v302, %v301
        %vm307 = vcmask 261120
        %v309 = vsel %vm307, %v290, 0
        %311 = vmatpush.bf16.msra.mxu0 0
        %312 = vmatpush.bf16.msra.mxu0 0
        %313 = vmatpush.bf16.msra.mxu0 0
        %314 = vmatpush.bf16.msra.mxu0 0
        %315 = vmatpush.bf16.msra.mxu0 0
        %316 = vmatpush.bf16.msra.mxu0 0
        %317 = vmatpush.bf16.msra.mxu0 %v304
        %318 = vmatpush.bf16.msra.mxu0 %v303
        %319 = vmatmul.bf16.gmra.mxu0 %v309
        %v320 = vpop.f32.mrf.mxu0
        %v321 = vadd.f32 0.0, %v320
        %v322 = vpop.f32.mrf.mxu0
        %323 = vdwg.mxu0
        %v324 = vmul.f32 %v321, 14.285714
        %v325 = vld [vmem:[%s252] sm:$0x1]
        %v326 = vld [vmem:[%s2] sm:$0xff]
        %327 = vset.pattern.permute.xlu0 0
        %328 = vperm.xlu0 %327, %v326
        %v329 = vpop.permute.xlu0 %328
        %v330 = vperm.slane %v325, 0
        %vm331 = vcmp.eq.s32.totalorder %v329, %v330
        %v332 = vlaneseq
        %v333 = vshrl.u32 %v332, 7
        %v334 = vlaneseq
        %v335 = vand.u32 %v334, 127
        %v336 = vstv %s280
        %v337 = vadd.s32 %v336, %v335
        %vm338 = vcmp.ne.s32.totalorder %v333, %v337
        %vm339 = vmand %vm331, %vm338
        %v340 = vld [vmem:[#allocation2] sm:$0xff]
        %341 = vmax.xlane.f32.xlu0 %v324
        %v342 = vpop.xlane.xlu0 %341
        %v343 = vmax.f32 %v340, %v342
        %v344 = vsub.f32 %v340, %v343
        %v345 = vmul.f32 %v344, 1.442695
        %v346 = vpow.pop %v345
        %348 = vset.pattern.permute.xlu0 0
        %349 = vperm.xlu0 %348, %v343
        %v350 = vpop.permute.xlu0 %349
        %v352 = vsub.f32 %v324, %v350
        %v353 = vmul.f32 %v352, 1.442695
        %v354 = vpow.pop %v353
        %v355 = vsel %vm338, %v354, 0.0
        %v356 = vld [vmem:[#allocation3] sm:$0xff]
        %v357 = vmul.f32 %v346, %v356
        %358 = vadd.xlane.f32.xlu0 %v355
        %v359 = vpop.xlane.xlu0 %358
        %v360 = vadd.f32 %v357, %v359
        %vm361 = vcmask 7168
        %362 = vst.msk [vmem:[#allocation3] sm:$0xff] %vm361, %v360
        %363 = vst.msk [vmem:[#allocation2] sm:$0xff] %vm361, %v343
        %v364 = vld [vmem:[#allocation4] sm:$0xff]
        %v365 = vsel %vm339, %v324, 0.0
        %366 = vadd.xlane.f32.xlu0 %v365
        %v367 = vpop.xlane.xlu0 %366
        %v368 = vadd.f32 %v364, %v367
        %369 = vst.msk [vmem:[#allocation4] sm:$0xff] %vm361, %v368
        %v370 = vld [vmem:[#allocation5] sm:$0xff]
        %v371 = vsel %vm339, 1, 0
        %v372 = vcvt.s32.f32 %v371
        %373 = vadd.xlane.f32.xlu0 %v372
        %v374 = vpop.xlane.xlu0 %373
        %v375 = vadd.f32 %v370, %v374
        %376 = vst.msk [vmem:[#allocation5] sm:$0xff] %vm361, %v375
        %p377 = scmp.eq.s32.totalorder %s21, 1
        // Predicated region
        $region57: #{tpu_custom_call.1} parent=39 // pred_check
          %p378 = pneg %p377
        $region58: #{tpu_custom_call.1} parent=39 // pred_check_branch
          %380 = sbr.rel (%p378) target = $region60
        $region59: #{tpu_custom_call.1} parent=39 // pred_region
          %v381 = vld [vmem:[#allocation3] sm:$0xff]
          %v382 = vadd.f32 %v381, 1e-12
          %v383 = vlog2.pop %v382
          %v384 = vmul.f32 %v383, 0.6931472
          %v385 = vld [vmem:[#allocation4] sm:$0xff]
          %v386 = vld [vmem:[#allocation5] sm:$0xff]
          %v387 = vrcp.pop %v386
          %v388 = vmul.f32 %v386, %v387
          %v389 = vsub.f32 1.0, %v388
          %v390 = vmul.f32 %v387, %v389
          %v391 = vadd.f32 %v387, %v390
          %vm392 = vweird.f32 %v386
          %vm393 = vweird.f32 %v387
          %vm394 = vmor %vm392, %vm393
          %v395 = vsel %vm394, %v387, %v391
          %v396 = vand.u32 2147483647, %v386
          %vm397 = vcmp.eq.f32.partialorder %v396, 8.507059e+37
          %v398 = vand.u32 %v386, 2147483648
          %v399 = vor.u32 1.1754944e-38, %v398
          %v400 = vsel %vm397, %v399, %v395
          %v401 = vmul.f32 %v385, %v400
          %v402 = vld [vmem:[#allocation2] sm:$0xff]
          %v403 = vsub.f32 %v401, %v402
          %v404 = vsub.f32 %v403, %v384
          %v405 = vsel %vm361, %v404, 0.0
          %406 = vadd.xlane.f32.xlu0 %v405
          %v407 = vpop.xlane.xlu0 %406
          %v408 = vrot.slane %v407, 4
          %v409 = vadd.f32 %v407, %v408
          %v410 = vrot.slane %v409, 2
          %v411 = vadd.f32 %v409, %v410
          %v412 = vrot.slane %v411, 1
          %v413 = vadd.f32 %v411, %v412
          %s414 = vtos %v413
          %v415 = vstv %s414
          %v416 = vmul.f32 %v415, -1.0
          %v417 = vmul.f32 %v416, 0.125
          %v418 = vld [vmem:[%s4] sm:$0xff]
          %vm419 = vcmask 130048
          %v420 = vsel %vm419, %v418, -inf
          %421 = vmax.xlane.f32.xlu0 %v420
          %v422 = vpop.xlane.xlu0 %421
          %v423 = vsub.f32 %v418, %v422
          %v424 = vmul.f32 %v423, 1.442695
          %v425 = vpow.pop %v424
          %v426 = vsel %vm419, %v425, 0.0
          %427 = vadd.xlane.f32.xlu0 %v426
          %v428 = vpop.xlane.xlu0 %427
          %v429 = vlog2.pop %v428
          %v430 = vmul.f32 %v429, 0.6931472
          %vm431 = vcmp.eq.s32.totalorder %v329, %v335
          %v432 = vsel %vm431, %v423, 0.0
          %v433 = vsel %vm419, %v432, 0.0
          %434 = vadd.xlane.f32.xlu0 %v433
          %v435 = vpop.xlane.xlu0 %434
          %v436 = vsub.f32 %v430, %v435
          %v437 = vsel %vm361, %v436, 0.0
          %438 = vadd.xlane.f32.xlu0 %v437
          %v439 = vpop.xlane.xlu0 %438
          %v440 = vrot.slane %v439, 4
          %v441 = vadd.f32 %v439, %v440
          %v442 = vrot.slane %v441, 2
          %v443 = vadd.f32 %v441, %v442
          %v444 = vrot.slane %v443, 1
          %v445 = vadd.f32 %v443, %v444
          %s446 = vtos %v445
          %v447 = vstv %s446
          %v448 = vmul.f32 %v447, 0.125
          %v449 = vadd.f32 %v448, %v417
          %vm450 = vcmask 0
          %451 = vst.msk [vmem:[#allocation12] sm:$0x1] %vm450, %v449
        $region60: #{tpu_custom_call.1} parent=39 // pred_fallthru
          _
        // Predicated region
        $region61: #{tpu_custom_call.1} parent=39 // pred_check
          %p452 = pneg %p149
        $region62: #{tpu_custom_call.1} parent=39 // pred_check_branch
          %454 = sbr.rel (%p452) target = $region64
        $region63: #{tpu_custom_call.1} parent=39 // pred_region
          %456 = vsyncadd [#allocation8], 0
          %s458 = sshll.u32 [#allocation12], 4
          %s459 = int_to_ptr.vmem [resolvable:$true] %s458
          %s460 = sshll.u32 %s5, 4
          %s461 = int_to_ptr.hbm [resolvable:$true] %s460
          %463 = dma.vmem_to_hbm [thread:$0]  %s459, 16, %s461, [#allocation8]
        $region64: #{tpu_custom_call.1} parent=39 // pred_fallthru
          _
        // Predicated region
        $region65: #{tpu_custom_call.1} parent=39 // pred_check
          %p464 = pneg %p149
        $region66: #{tpu_custom_call.1} parent=39 // pred_check_branch
          %466 = sbr.rel (%p464) target = $region68
        $region67: #{tpu_custom_call.1} parent=39 // pred_region
          %468 = dma.done [#allocation8], 16
        $region68: #{tpu_custom_call.1} parent=39 // pred_fallthru
          _
      $region40: #{tpu_custom_call.1} parent=5 // pred_fallthru
        _
      %p469 = scmp.le.s32.totalorder 2, %s16
      // Predicated region
      $region69: #{tpu_custom_call.1} parent=5 // pred_check
        %p470 = pneg %p469
      $region70: #{tpu_custom_call.1} parent=5 // pred_check_branch
        %472 = sbr.rel (%p470) target = $region72
      $region71: #{tpu_custom_call.1} parent=5 // pred_region
        %s473 = ssub.s32 %s16, 2
      $region72: #{tpu_custom_call.1} parent=5 // pred_fallthru
        _
    $region6: #{tpu_custom_call.1} parent=1 // loop_footer
      %s20 = sadd.s32 1, %s16
    $region7: #{tpu_custom_call.1} parent=1 // loop_footer_branch
      %15 = sbr.rel target = $region3
    $region8: #{tpu_custom_call.1} parent=1 // loop_exit
      _
    %474 = vsyncpa [#allocation7], 1
    %s475 = scalar_lea.sflag [#allocation7], 1
    %476 = vsyncpa %s475, 1
    %477 = vsyncpa [#allocation10], 1
    %s478 = scalar_lea.sflag [#allocation10], 1
    %479 = vsyncpa %s478, 1
    %480 = vsyncpa [#allocation8], 1
    %s481 = scalar_lea.sflag [#allocation8], 1
    %482 = vsyncpa %s481, 1

</llo_original>
